<compile_context>
chip_gen: v6e
topology: v6e:2x2x1
jax: 0.10.0
libtpu: 0.0.40
codegen_flags: <defaults>
</compile_context>

<pallas_src>
import jax
import jax.numpy as jnp
from jax.experimental import pallas as pl
from jax.experimental.pallas import tpu as pltpu

HIDDEN = 64
LANE = 128
SUBLANE = 8
HID_P = 128                              # HIDDEN lane-padded to the 128-lane width
MAX_TILE_B = 2048                        # upper cap on batch tile (HBM-roofline sweet spot)
MIN_ROWS_PER_CORE = 16                   # split batch over 2 TCs only when >=16 rows/core
VMEM_BUDGET_BYTES = 20 * 1024 * 1024     # conservative per-step budget (fits every gen)
VMEM_LIMIT_BYTES = 32 * 1024 * 1024      # explicit scoped-VMEM limit (< v7x 64 MiB physical)


def _round_up(n, m):
    return ((n + m - 1) // m) * m


# --------------------------------------------------------------------------- #
# Kernel: fused 3-layer MLP on one batch tile.  Weights are bf16 and VMEM-
# resident; matmuls accumulate in f32; bias add / ReLU in f32; output stored
# at native output_dim width (narrow masked store, minimal HBM writeback).
# --------------------------------------------------------------------------- #
def dqn_kernel(x_ref, w1_ref, b1_ref, w2_ref, b2_ref, w3_ref, b3_ref, o_ref):
    h1 = jnp.dot(x_ref[...], w1_ref[...], preferred_element_type=jnp.float32)
    h1 = jnp.maximum(h1 + b1_ref[...], 0.0)

    h2 = jnp.dot(h1.astype(w2_ref.dtype), w2_ref[...],
                 preferred_element_type=jnp.float32)
    h2 = jnp.maximum(h2 + b2_ref[...], 0.0)

    out = jnp.dot(h2.astype(w3_ref.dtype), w3_ref[...],
                  preferred_element_type=jnp.float32)
    o_ref[...] = (out + b3_ref[...]).astype(o_ref.dtype)


# --------------------------------------------------------------------------- #
# One-time parameter preparation (pad + cast).  Do NOT call per forward step.
# --------------------------------------------------------------------------- #
def prepare_params(params, input_dim, output_dim, compute_dtype=jnp.bfloat16):
    w1, b1, w2, b2, w3, b3 = params
    # Only lane-pad the input dim when it is large (flattened observations);
    # for tiny state dims a full-extent block is already legal and cheaper.
    in_p = input_dim if input_dim <= LANE else _round_up(input_dim, LANE)

    w1p = jnp.zeros((in_p, HID_P), compute_dtype).at[:input_dim, :HIDDEN].set(
        w1.astype(compute_dtype))
    b1p = jnp.zeros((1, HID_P), jnp.float32).at[:, :HIDDEN].set(
        b1.reshape(1, HIDDEN).astype(jnp.float32))
    w2p = jnp.zeros((HID_P, HID_P), compute_dtype).at[:HIDDEN, :HIDDEN].set(
        w2.astype(compute_dtype))
    b2p = jnp.zeros((1, HID_P), jnp.float32).at[:, :HIDDEN].set(
        b2.reshape(1, HIDDEN).astype(jnp.float32))
    w3p = jnp.zeros((HID_P, output_dim), compute_dtype).at[:HIDDEN, :].set(
        w3.astype(compute_dtype))
    b3p = b3.reshape(1, output_dim).astype(jnp.float32)

    return {
        "w1": w1p, "b1": b1p, "w2": w2p, "b2": b2p, "w3": w3p, "b3": b3p,
        "input_dim": input_dim, "in_p": in_p, "output_dim": output_dim,
        "compute_dtype": compute_dtype,
    }


def _max_tile_b(in_p, output_dim, compute_dtype):
    """Largest batch tile that keeps double-buffered I/O + scratch in budget."""
    in_bytes = jnp.dtype(compute_dtype).itemsize
    per_row = (2 * in_p * in_bytes            # x tile, double-buffered
               + 2 * output_dim * 4           # out tile (f32), double-buffered
               + 2 * HID_P * 4                # h1, h2 intermediates (f32)
               + 2 * HID_P * in_bytes)        # their bf16 casts
    weight_bytes = ((in_p * HID_P + HID_P * HID_P + HID_P * output_dim) * in_bytes
                    + (2 * HID_P + output_dim) * 4)
    avail = max(VMEM_BUDGET_BYTES - weight_bytes, SUBLANE * per_row)
    mb = (avail // per_row // SUBLANE) * SUBLANE
    return int(max(SUBLANE, min(mb, MAX_TILE_B)))


# --------------------------------------------------------------------------- #
# Forward pass.  `prep` is the output of prepare_params (pre-padded weights).
# --------------------------------------------------------------------------- #
def dqn_forward(x, prep):
    B = x.shape[0]
    input_dim = prep["input_dim"]
    in_p = prep["in_p"]
    output_dim = prep["output_dim"]
    compute_dtype = prep["compute_dtype"]

    x2d = x.reshape(B, -1)
    assert x2d.shape[1] == input_dim, "input feature dim mismatch"

    # ---- batch tiling: minimize padding, keep VMEM budget, feed both v7x TCs
    max_tb = _max_tile_b(in_p, output_dim, compute_dtype)
    n_tiles_min = 2 if B >= 2 * MIN_ROWS_PER_CORE else 1
    n_tiles = max(pl.cdiv(B, max_tb), n_tiles_min)
    tb = _round_up(pl.cdiv(B, n_tiles), SUBLANE)
    b_pad = _round_up(B, tb)
    grid = (b_pad // tb,)

    xk = x2d.astype(compute_dtype)
    if b_pad != B or in_p != input_dim:
        xk = jnp.pad(xk, ((0, b_pad - B), (0, in_p - input_dim)))

    w1p, b1p = prep["w1"], prep["b1"]
    w2p, b2p = prep["w2"], prep["b2"]
    w3p, b3p = prep["w3"], prep["b3"]

    in_bytes = jnp.dtype(compute_dtype).itemsize
    flops = 2 * b_pad * (in_p * HID_P + HID_P * HID_P + HID_P * output_dim)
    bytes_accessed = (b_pad * in_p * in_bytes                      # x stream
                      + b_pad * output_dim * 4                     # out writeback
                      + (w1p.size + w2p.size + w3p.size) * in_bytes
                      + (b1p.size + b2p.size + b3p.size) * 4)

    out = pl.pallas_call(
        dqn_kernel,
        out_shape=jax.ShapeDtypeStruct((b_pad, output_dim), jnp.float32),
        grid=grid,
        in_specs=[
            pl.BlockSpec((tb, in_p), lambda i: (i, 0)),     # streamed x tile
            pl.BlockSpec(w1p.shape, lambda i: (0, 0)),      # weights stay resident
            pl.BlockSpec(b1p.shape, lambda i: (0, 0)),
            pl.BlockSpec(w2p.shape, lambda i: (0, 0)),
            pl.BlockSpec(b2p.shape, lambda i: (0, 0)),
            pl.BlockSpec(w3p.shape, lambda i: (0, 0)),
            pl.BlockSpec(b3p.shape, lambda i: (0, 0)),
        ],
        out_specs=pl.BlockSpec((tb, output_dim), lambda i: (i, 0)),  # native-width Q out
        compiler_params=pltpu.CompilerParams(
            dimension_semantics=("parallel",),
            vmem_limit_bytes=VMEM_LIMIT_BYTES),
        cost_estimate=pl.CostEstimate(
            flops=flops, transcendentals=0, bytes_accessed=bytes_accessed),
    )(xk, w1p, b1p, w2p, b2p, w3p, b3p)

    return out[:B]  # drop padded batch rows only; columns are already exact


# --------------------------------------------------------------------------- #
# Init matching PyTorch Linear fan-in init; weights pre-transposed to (in,out).
# --------------------------------------------------------------------------- #
def init_params(key, input_dim, output_dim):
    ks = jax.random.split(key, 6)

    def lin(kw, kb, fan_in, fan_out):
        bound = 1.0 / jnp.sqrt(fan_in)
        w = jax.random.uniform(kw, (fan_in, fan_out), jnp.float32, -bound, bound)
        b = jax.random.uniform(kb, (1, fan_out), jnp.float32, -bound, bound)
        return w, b

    w1, b1 = lin(ks[0], ks[1], input_dim, HIDDEN)
    w2, b2 = lin(ks[2], ks[3], HIDDEN, HIDDEN)
    w3, b3 = lin(ks[4], ks[5], HIDDEN, output_dim)
    return (w1, b1, w2, b2, w3, b3)


def _ref_forward(x2d, params, operand_dtype):
    """Pure-JAX reference; operand_dtype=bf16 mirrors the kernel's matmul dtype."""
    w1, b1, w2, b2, w3, b3 = params
    d = operand_dtype
    h = jnp.maximum(jnp.dot(x2d.astype(d), w1.astype(d),
                            preferred_element_type=jnp.float32) + b1, 0.0)
    h = jnp.maximum(jnp.dot(h.astype(d), w2.astype(d),
                            preferred_element_type=jnp.float32) + b2, 0.0)
    return jnp.dot(h.astype(d), w3.astype(d),
                   preferred_element_type=jnp.float32) + b3


if __name__ == "__main__":
    key = jax.random.PRNGKey(0)
    k_x, k_x2, k_p = jax.random.split(key, 3)

    batch, input_dim, output_dim = 8, 16, 4
    x = jax.random.normal(k_x, (batch, input_dim), jnp.float32)
    params = init_params(k_p, input_dim, output_dim)
    prep = prepare_params(params, input_dim, output_dim)   # one-time pad + cast

    out = dqn_forward(x, prep)
    jax.block_until_ready(out)
    assert out.shape == (batch, output_dim)

    x2d = x.reshape(batch, -1)
    ref_bf16 = _ref_forward(x2d, params, jnp.bfloat16)   # same operand dtype as kernel
    ref_f32 = _ref_forward(x2d, params, jnp.float32)     # PyTorch fp32 semantics
    assert jnp.allclose(out, ref_bf16, atol=2e-3, rtol=2e-3), "mismatch vs bf16 reference"
    assert jnp.allclose(out, ref_f32, atol=5e-2, rtol=5e-2), "mismatch vs fp32 reference"

    # Second check: batch that exercises batch padding + a multi-tile grid
    # (on v7x the ("parallel",) axis then shards across both TensorCores).
    batch2 = 40
    x_big = jax.random.normal(k_x2, (batch2, input_dim), jnp.float32)
    out_big = dqn_forward(x_big, prep)
    jax.block_until_ready(out_big)
    ref_big = _ref_forward(x_big.reshape(batch2, -1), params, jnp.bfloat16)
    assert out_big.shape == (batch2, output_dim)
    assert jnp.allclose(out_big, ref_big, atol=2e-3, rtol=2e-3), "mismatch (tiled batch)"

    print("KERNEL_OK")
</pallas_src>

<mosaic_0001>
module attributes {stable_mosaic.version = 11 : i64} {
  func.func @dqn_kernel(%arg0: i32, %arg1: memref<8x16xbf16, #tpu.memory_space<vmem>>, %arg2: memref<16x128xbf16, #tpu.memory_space<vmem>>, %arg3: memref<1x128xf32, #tpu.memory_space<vmem>>, %arg4: memref<128x128xbf16, #tpu.memory_space<vmem>>, %arg5: memref<1x128xf32, #tpu.memory_space<vmem>>, %arg6: memref<128x4xbf16, #tpu.memory_space<vmem>>, %arg7: memref<1x4xf32, #tpu.memory_space<vmem>>, %arg8: memref<8x4xf32, #tpu.memory_space<vmem>>) attributes {dimension_semantics = [#tpu.dimension_semantics<parallel>], iteration_bounds = array<i64: 1>, scalar_prefetch = 0 : i64, scratch_operands = 0 : i64, tpu.core_type = #tpu.core_type<tc>, window_params = [{transform_indices = @transform_0, window_bounds = array<i64: 8, 16>}, {pipeline_mode = #tpu.pipeline_mode<synchronous>, transform_indices = @transform_1, window_bounds = array<i64: 16, 128>}, {pipeline_mode = #tpu.pipeline_mode<synchronous>, transform_indices = @transform_2, window_bounds = array<i64: 1, 128>}, {pipeline_mode = #tpu.pipeline_mode<synchronous>, transform_indices = @transform_3, window_bounds = array<i64: 128, 128>}, {pipeline_mode = #tpu.pipeline_mode<synchronous>, transform_indices = @transform_4, window_bounds = array<i64: 1, 128>}, {pipeline_mode = #tpu.pipeline_mode<synchronous>, transform_indices = @transform_5, window_bounds = array<i64: 128, 4>}, {pipeline_mode = #tpu.pipeline_mode<synchronous>, transform_indices = @transform_6, window_bounds = array<i64: 1, 4>}, {transform_indices = @transform_7, window_bounds = array<i64: 8, 4>}]} {
    %c0 = arith.constant 0 : index
    %c0_0 = arith.constant 0 : index
    %0 = vector.load %arg1[%c0, %c0_0] : memref<8x16xbf16, #tpu.memory_space<vmem>>, vector<8x16xbf16>
    %c0_1 = arith.constant 0 : index
    %c0_2 = arith.constant 0 : index
    %1 = vector.load %arg2[%c0_1, %c0_2] : memref<16x128xbf16, #tpu.memory_space<vmem>>, vector<16x128xbf16>
    %cst = arith.constant dense<0.000000e+00> : vector<8x128xf32>
    %2 = tpu.matmul %0, %1, %cst {dimension_numbers = #tpu.dot_dimension_numbers<[1], [0], [0], [1], [0, 0, 1, 1], [], []>} : vector<8x16xbf16>, vector<16x128xbf16>, vector<8x128xf32> -> vector<8x128xf32>
    %c0_3 = arith.constant 0 : index
    %c0_4 = arith.constant 0 : index
    %3 = vector.load %arg3[%c0_3, %c0_4] : memref<1x128xf32, #tpu.memory_space<vmem>>, vector<1x128xf32>
    %4 = vector.broadcast %3 : vector<1x128xf32> to vector<8x128xf32>
    %5 = arith.addf %2, %4 : vector<8x128xf32>
    %cst_5 = arith.constant 0.000000e+00 : f32
    %6 = vector.broadcast %cst_5 : f32 to vector<8x128xf32>
    %7 = arith.maximumf %5, %6 : vector<8x128xf32>
    %8 = arith.truncf %7 : vector<8x128xf32> to vector<8x128xbf16>
    %c0_6 = arith.constant 0 : index
    %c0_7 = arith.constant 0 : index
    %9 = vector.load %arg4[%c0_6, %c0_7] : memref<128x128xbf16, #tpu.memory_space<vmem>>, vector<128x128xbf16>
    %cst_8 = arith.constant dense<0.000000e+00> : vector<8x128xf32>
    %10 = tpu.matmul %8, %9, %cst_8 {dimension_numbers = #tpu.dot_dimension_numbers<[1], [0], [0], [1], [0, 0, 1, 1], [], []>} : vector<8x128xbf16>, vector<128x128xbf16>, vector<8x128xf32> -> vector<8x128xf32>
    %c0_9 = arith.constant 0 : index
    %c0_10 = arith.constant 0 : index
    %11 = vector.load %arg5[%c0_9, %c0_10] : memref<1x128xf32, #tpu.memory_space<vmem>>, vector<1x128xf32>
    %12 = vector.broadcast %11 : vector<1x128xf32> to vector<8x128xf32>
    %13 = arith.addf %10, %12 : vector<8x128xf32>
    %cst_11 = arith.constant 0.000000e+00 : f32
    %14 = vector.broadcast %cst_11 : f32 to vector<8x128xf32>
    %15 = arith.maximumf %13, %14 : vector<8x128xf32>
    %16 = arith.truncf %15 : vector<8x128xf32> to vector<8x128xbf16>
    %c0_12 = arith.constant 0 : index
    %c0_13 = arith.constant 0 : index
    %17 = vector.load %arg6[%c0_12, %c0_13] : memref<128x4xbf16, #tpu.memory_space<vmem>>, vector<128x4xbf16>
    %cst_14 = arith.constant dense<0.000000e+00> : vector<8x4xf32>
    %18 = tpu.matmul %16, %17, %cst_14 {dimension_numbers = #tpu.dot_dimension_numbers<[1], [0], [0], [1], [0, 0, 1, 1], [], []>} : vector<8x128xbf16>, vector<128x4xbf16>, vector<8x4xf32> -> vector<8x4xf32>
    %c0_15 = arith.constant 0 : index
    %c0_16 = arith.constant 0 : index
    %19 = vector.load %arg7[%c0_15, %c0_16] : memref<1x4xf32, #tpu.memory_space<vmem>>, vector<1x4xf32>
    %20 = vector.broadcast %19 : vector<1x4xf32> to vector<8x4xf32>
    %21 = arith.addf %18, %20 : vector<8x4xf32>
    %c0_17 = arith.constant 0 : index
    %c0_18 = arith.constant 0 : index
    %22 = vector.load %arg8[%c0_17, %c0_18] : memref<8x4xf32, #tpu.memory_space<vmem>>, vector<8x4xf32>
    tpu.vector_store %arg8[%c0_17, %c0_18], %21 {strides = array<i32>} : memref<8x4xf32, #tpu.memory_space<vmem>>, vector<8x4xf32>,
    return
  }
  func.func @transform_0(%arg0: i32) -> (i32, i32) {
    %c0_i32 = arith.constant 0 : i32
    %c0_i32_0 = arith.constant 0 : i32
    return %arg0, %c0_i32 : i32, i32
  }
  func.func @transform_1(%arg0: i32) -> (i32, i32) {
    %c0_i32 = arith.constant 0 : i32
    %c0_i32_0 = arith.constant 0 : i32
    %c0_i32_1 = arith.constant 0 : i32
    return %c0_i32, %c0_i32_0 : i32, i32
  }
  func.func @transform_2(%arg0: i32) -> (i32, i32) {
    %c0_i32 = arith.constant 0 : i32
    %c0_i32_0 = arith.constant 0 : i32
    %c0_i32_1 = arith.constant 0 : i32
    return %c0_i32, %c0_i32_0 : i32, i32
  }
  func.func @transform_3(%arg0: i32) -> (i32, i32) {
    %c0_i32 = arith.constant 0 : i32
    %c0_i32_0 = arith.constant 0 : i32
    %c0_i32_1 = arith.constant 0 : i32
    return %c0_i32, %c0_i32_0 : i32, i32
  }
  func.func @transform_4(%arg0: i32) -> (i32, i32) {
    %c0_i32 = arith.constant 0 : i32
    %c0_i32_0 = arith.constant 0 : i32
    %c0_i32_1 = arith.constant 0 : i32
    return %c0_i32, %c0_i32_0 : i32, i32
  }
  func.func @transform_5(%arg0: i32) -> (i32, i32) {
    %c0_i32 = arith.constant 0 : i32
    %c0_i32_0 = arith.constant 0 : i32
    %c0_i32_1 = arith.constant 0 : i32
    return %c0_i32, %c0_i32_0 : i32, i32
  }
  func.func @transform_6(%arg0: i32) -> (i32, i32) {
    %c0_i32 = arith.constant 0 : i32
    %c0_i32_0 = arith.constant 0 : i32
    %c0_i32_1 = arith.constant 0 : i32
    return %c0_i32, %c0_i32_0 : i32, i32
  }
  func.func @transform_7(%arg0: i32) -> (i32, i32) {
    %c0_i32 = arith.constant 0 : i32
    %c0_i32_0 = arith.constant 0 : i32
    return %arg0, %c0_i32 : i32, i32
  }
}

</mosaic_0001>

<llo_original>
// kernel: tpu_custom_call.1
$region0: #{tpu_custom_call.1}
  #allocation0 [shape = 'u32[]', space=smem, size = 0x4, offset = 0x4, fixed_abs, tag = 'smem constant byte address 0x4 - core index']
  #allocation1 [shape = 'u32[144,128]{1,0:T(1,128)}', space=vmem, size = 0x12000, scoped, tag = 'internal scratch']
  %s0 = inlined_call_operand.vmem [shape: bf16[8,16], index: 0, kind: input, shape index: {}]
  %s1 = inlined_call_operand.hbm [shape: bf16[16,128], index: 1, kind: input, shape index: {}]
  %s2 = inlined_call_operand.vmem [shape: f32[1,128], index: 2, kind: input, shape index: {}]
  %s3 = inlined_call_operand.vmem [shape: bf16[128,128], index: 3, kind: input, shape index: {}]
  %s4 = inlined_call_operand.vmem [shape: f32[1,128], index: 4, kind: input, shape index: {}]
  %s5 = inlined_call_operand.vmem [shape: bf16[128,4], index: 5, kind: input, shape index: {}]
  %s6 = inlined_call_operand.vmem [shape: f32[1,4], index: 6, kind: input, shape index: {}]
  %s7 = inlined_call_operand.vmem [shape: f32[8,4], index: 7, kind: output, shape index: {}]
  %s8 = sld [smem:[#allocation0]]
  $region42: #{tpu_custom_call.1} parent=0
    _
  %s10 = ssub.s32 1, %s8
  %s11 = scalar_select 0, %s10, %s8
  $region1: #{tpu_custom_call.1} parent=0
    #allocation2 [shape = 'u8[4096]{0}', space=vmem, size = 0x1000, scoped, tag = 'input window, operand 1, single buffered']
    #allocation3 [shape = 's32[1]{0}', space=sflag, size = 0x4, scoped, tag = 'scoped memory for tpu_custom_call.1']
    %12 = vsyncpa [#allocation3], 0
    // Predicated region
    $region2: #{tpu_custom_call.1} parent=1 // pred_check
      _
    $region3: #{tpu_custom_call.1} parent=1 // pred_check_branch
      %14 = sbr.rel (0) target = $region5
    $region4: #{tpu_custom_call.1} parent=1 // pred_region
      _
    $region5: #{tpu_custom_call.1} parent=1 // pred_fallthru
      _
    // Predicated region
    $region6: #{tpu_custom_call.1} parent=1 // pred_check
      _
    $region7: #{tpu_custom_call.1} parent=1 // pred_check_branch
      %16 = sbr.rel (0) target = $region9
    $region8: #{tpu_custom_call.1} parent=1 // pred_region
      %s18 = ssub.s32 128, 128
      %19 = vsyncadd [#allocation3], %s18
      %s20 = sshll.u32 [#allocation2], 4
      %s21 = int_to_ptr.vmem [resolvable:$true] %s20
      %26 = dma.hbm_to_vmem [thread:$0]  %s1, 128, %s21, [#allocation3], 64, 64, 4
    $region9: #{tpu_custom_call.1} parent=1 // pred_fallthru
      _
    // Predicated region
    $region10: #{tpu_custom_call.1} parent=1 // pred_check
      _
    $region11: #{tpu_custom_call.1} parent=1 // pred_check_branch
      %28 = sbr.rel (0) target = $region13
    $region12: #{tpu_custom_call.1} parent=1 // pred_region
      _
    $region13: #{tpu_custom_call.1} parent=1 // pred_fallthru
      _
    // Predicated region
    $region14: #{tpu_custom_call.1} parent=1 // pred_check
      _
    $region15: #{tpu_custom_call.1} parent=1 // pred_check_branch
      %30 = sbr.rel (0) target = $region17
    $region16: #{tpu_custom_call.1} parent=1 // pred_region
      _
    $region17: #{tpu_custom_call.1} parent=1 // pred_fallthru
      _
    // Predicated region
    $region18: #{tpu_custom_call.1} parent=1 // pred_check
      _
    $region19: #{tpu_custom_call.1} parent=1 // pred_check_branch
      %32 = sbr.rel (0) target = $region21
    $region20: #{tpu_custom_call.1} parent=1 // pred_region
      _
    $region21: #{tpu_custom_call.1} parent=1 // pred_fallthru
      _
    // Predicated region
    $region22: #{tpu_custom_call.1} parent=1 // pred_check
      _
    $region23: #{tpu_custom_call.1} parent=1 // pred_check_branch
      %34 = sbr.rel (0) target = $region25
    $region24: #{tpu_custom_call.1} parent=1 // pred_region
      _
    $region25: #{tpu_custom_call.1} parent=1 // pred_fallthru
      _
    // Predicated region
    $region26: #{tpu_custom_call.1} parent=1 // pred_check
      _
    $region27: #{tpu_custom_call.1} parent=1 // pred_check_branch
      %36 = sbr.rel (0) target = $region29
    $region28: #{tpu_custom_call.1} parent=1 // pred_region
      _
    $region29: #{tpu_custom_call.1} parent=1 // pred_fallthru
      _
    // Predicated region
    $region30: #{tpu_custom_call.1} parent=1 // pred_check
      _
    $region31: #{tpu_custom_call.1} parent=1 // pred_check_branch
      %38 = sbr.rel (0) target = $region33
    $region32: #{tpu_custom_call.1} parent=1 // pred_region
      %39 = dma.done [#allocation3], 128
    $region33: #{tpu_custom_call.1} parent=1 // pred_fallthru
      _
    %v41 = vld [vmem:[%s0] sm:$0xf]
    %v42 = vld [vmem:[#allocation2] sm:$0xf]
    %v43 = vld [vmem:[#allocation2 + $0x4] sm:$0xf]
    %v44 = vld [vmem:[%s2] sm:$0x1]
    %v46 = vlaneseq
    %v47 = vshrl.u32 %v46, 7
    %v48 = vsub.s32 0, %v47
    %v49 = vrot.slane %v44, %v48
    %v53 = vunpack.c.l.b16 %v42
    %v54 = vunpack.c.l.b16 %v43
    %v55 = vpack.c.b16 %v54, %v53
    %vm57 = vcmask 130048
    %v59 = vsel %vm57, %v41, 0
    %61 = vmatprep.subr.bf16.mxu0 0
    %62 = vmatpush1.bf16.msra.mxu0 0
    %63 = vmatprep.subr.bf16.mxu0 0
    %64 = vmatpush1.bf16.msra.mxu0 0
    %65 = vmatprep.subr.bf16.mxu0 0
    %66 = vmatpush1.bf16.msra.mxu0 0
    %67 = vmatprep.subr.bf16.mxu0 0
    %68 = vmatpush1.bf16.msra.mxu0 0
    %69 = vmatprep.subr.bf16.mxu0 0
    %70 = vmatpush1.bf16.msra.mxu0 0
    %71 = vmatprep.subr.bf16.mxu0 0
    %72 = vmatpush1.bf16.msra.mxu0 0
    %73 = vmatprep.subr.bf16.mxu0 0
    %74 = vmatpush1.bf16.msra.mxu0 0
    %75 = vmatprep.subr.bf16.mxu0 0
    %76 = vmatpush1.bf16.msra.mxu0 %v55
    %77 = vmatprep.subr.bf16.mxu0 0
    %78 = vmatpush2.bf16.msra.mxu0 0
    %79 = vmatprep.subr.bf16.mxu0 0
    %80 = vmatpush2.bf16.msra.mxu0 0
    %81 = vmatprep.subr.bf16.mxu0 0
    %82 = vmatpush2.bf16.msra.mxu0 0
    %83 = vmatprep.subr.bf16.mxu0 0
    %84 = vmatpush2.bf16.msra.mxu0 0
    %85 = vmatprep.subr.bf16.mxu0 0
    %86 = vmatpush2.bf16.msra.mxu0 0
    %87 = vmatprep.subr.bf16.mxu0 0
    %88 = vmatpush2.bf16.msra.mxu0 0
    %89 = vmatprep.subr.bf16.mxu0 0
    %90 = vmatpush2.bf16.msra.mxu0 0
    %91 = vmatprep.subr.bf16.mxu0 0
    %92 = vmatpush2.bf16.msra.mxu0 0
    %93 = vmatprep.mubr.bf16.mxu0 0
    %94 = vmatmul.mubr.bf16.gmra.mxu0 %v59
    %v95 = vpop.f32.mrf.mxu0
    %v96 = vadd.f32 %v49, %v95
    %v97 = vpop.f32.mrf.mxu0
    %v98 = vpop.f32.mrf.mxu0
    %v99 = vpop.f32.mrf.mxu0
    %100 = vdwg.mxu0
    %v101 = vmax.f32 %v96, 0.0
    %v102 = vpack.c.bf16 %v101, %v101
    %v103 = vld [vmem:[%s3] sm:$0xf]
    %v104 = vld [vmem:[%s3 + $0x4] sm:$0xf]
    %v105 = vld [vmem:[%s3 + $0x8] sm:$0xf]
    %v106 = vld [vmem:[%s3 + $0xc] sm:$0xf]
    %v107 = vld [vmem:[%s3 + $0x10] sm:$0xf]
    %v108 = vld [vmem:[%s3 + $0x14] sm:$0xf]
    %v109 = vld [vmem:[%s3 + $0x18] sm:$0xf]
    %v110 = vld [vmem:[%s3 + $0x1c] sm:$0xf]
    %v111 = vld [vmem:[%s3 + $0x20] sm:$0xf]
    %v112 = vld [vmem:[%s3 + $0x24] sm:$0xf]
    %v113 = vld [vmem:[%s3 + $0x28] sm:$0xf]
    %v114 = vld [vmem:[%s3 + $0x2c] sm:$0xf]
    %v115 = vld [vmem:[%s3 + $0x30] sm:$0xf]
    %v116 = vld [vmem:[%s3 + $0x34] sm:$0xf]
    %v117 = vld [vmem:[%s3 + $0x38] sm:$0xf]
    %v118 = vld [vmem:[%s3 + $0x3c] sm:$0xf]
    %v119 = vld [vmem:[%s4] sm:$0x1]
    %v121 = vlaneseq
    %v122 = vshrl.u32 %v121, 7
    %v123 = vsub.s32 0, %v122
    %v124 = vrot.slane %v119, %v123
    %v142 = vunpack.c.l.b16 %v103
    %v143 = vunpack.c.l.b16 %v104
    %v144 = vunpack.c.l.b16 %v105
    %v145 = vunpack.c.l.b16 %v106
    %v146 = vunpack.c.l.b16 %v107
    %v147 = vunpack.c.l.b16 %v108
    %v148 = vunpack.c.l.b16 %v109
    %v149 = vunpack.c.l.b16 %v110
    %v150 = vunpack.c.l.b16 %v111
    %v151 = vunpack.c.l.b16 %v112
    %v152 = vunpack.c.l.b16 %v113
    %v153 = vunpack.c.l.b16 %v114
    %v154 = vunpack.c.l.b16 %v115
    %v155 = vunpack.c.l.b16 %v116
    %v156 = vunpack.c.l.b16 %v117
    %v157 = vunpack.c.l.b16 %v118
    %v158 = vpack.c.b16 %v143, %v142
    %v159 = vpack.c.b16 %v145, %v144
    %v160 = vpack.c.b16 %v147, %v146
    %v161 = vpack.c.b16 %v149, %v148
    %v162 = vpack.c.b16 %v151, %v150
    %v163 = vpack.c.b16 %v153, %v152
    %v164 = vpack.c.b16 %v155, %v154
    %v165 = vpack.c.b16 %v157, %v156
    %174 = vmatprep.subr.bf16.mxu0 0
    %175 = vmatpush1.bf16.msra.mxu0 %v165
    %176 = vmatprep.subr.bf16.mxu0 0
    %177 = vmatpush1.bf16.msra.mxu0 %v164
    %178 = vmatprep.subr.bf16.mxu0 0
    %179 = vmatpush1.bf16.msra.mxu0 %v163
    %180 = vmatprep.subr.bf16.mxu0 0
    %181 = vmatpush1.bf16.msra.mxu0 %v162
    %182 = vmatprep.subr.bf16.mxu0 0
    %183 = vmatpush1.bf16.msra.mxu0 %v161
    %184 = vmatprep.subr.bf16.mxu0 0
    %185 = vmatpush1.bf16.msra.mxu0 %v160
    %186 = vmatprep.subr.bf16.mxu0 0
    %187 = vmatpush1.bf16.msra.mxu0 %v159
    %188 = vmatprep.subr.bf16.mxu0 0
    %189 = vmatpush1.bf16.msra.mxu0 %v158
    %190 = vmatprep.subr.bf16.mxu0 0
    %191 = vmatpush2.bf16.msra.mxu0 0
    %192 = vmatprep.subr.bf16.mxu0 0
    %193 = vmatpush2.bf16.msra.mxu0 0
    %194 = vmatprep.subr.bf16.mxu0 0
    %195 = vmatpush2.bf16.msra.mxu0 0
    %196 = vmatprep.subr.bf16.mxu0 0
    %197 = vmatpush2.bf16.msra.mxu0 0
    %198 = vmatprep.subr.bf16.mxu0 0
    %199 = vmatpush2.bf16.msra.mxu0 0
    %200 = vmatprep.subr.bf16.mxu0 0
    %201 = vmatpush2.bf16.msra.mxu0 0
    %202 = vmatprep.subr.bf16.mxu0 0
    %203 = vmatpush2.bf16.msra.mxu0 0
    %204 = vmatprep.subr.bf16.mxu0 0
    %205 = vmatpush2.bf16.msra.mxu0 0
    %206 = vmatprep.mubr.bf16.mxu0 0
    %207 = vmatmul.mubr.bf16.gmra.mxu0 %v102
    %v208 = vpop.f32.mrf.mxu0
    %v209 = vadd.f32 %v124, %v208
    %v210 = vpop.f32.mrf.mxu0
    %v211 = vpop.f32.mrf.mxu0
    %v212 = vpop.f32.mrf.mxu0
    %213 = vdwg.mxu0
    %v214 = vmax.f32 %v209, 0.0
    %v215 = vpack.c.bf16 %v214, %v214
    %v216 = vld [vmem:[%s5] sm:$0xf]
    %v217 = vld [vmem:[%s5 + $0x4] sm:$0xf]
    %v218 = vld [vmem:[%s5 + $0x8] sm:$0xf]
    %v219 = vld [vmem:[%s5 + $0xc] sm:$0xf]
    %v220 = vld [vmem:[%s5 + $0x10] sm:$0xf]
    %v221 = vld [vmem:[%s5 + $0x14] sm:$0xf]
    %v222 = vld [vmem:[%s5 + $0x18] sm:$0xf]
    %v223 = vld [vmem:[%s5 + $0x1c] sm:$0xf]
    %v224 = vld [vmem:[%s5 + $0x20] sm:$0xf]
    %v225 = vld [vmem:[%s5 + $0x24] sm:$0xf]
    %v226 = vld [vmem:[%s5 + $0x28] sm:$0xf]
    %v227 = vld [vmem:[%s5 + $0x2c] sm:$0xf]
    %v228 = vld [vmem:[%s5 + $0x30] sm:$0xf]
    %v229 = vld [vmem:[%s5 + $0x34] sm:$0xf]
    %v230 = vld [vmem:[%s5 + $0x38] sm:$0xf]
    %v231 = vld [vmem:[%s5 + $0x3c] sm:$0xf]
    %v232 = vld [vmem:[%s6] sm:$0x1]
    %v234 = vlaneseq
    %v235 = vshrl.u32 %v234, 7
    %v236 = vsub.s32 0, %v235
    %v237 = vrot.slane %v232, %v236
    %v255 = vunpack.c.l.b16 %v216
    %v256 = vunpack.c.l.b16 %v217
    %v257 = vunpack.c.l.b16 %v218
    %v258 = vunpack.c.l.b16 %v219
    %v259 = vunpack.c.l.b16 %v220
    %v260 = vunpack.c.l.b16 %v221
    %v261 = vunpack.c.l.b16 %v222
    %v262 = vunpack.c.l.b16 %v223
    %v263 = vunpack.c.l.b16 %v224
    %v264 = vunpack.c.l.b16 %v225
    %v265 = vunpack.c.l.b16 %v226
    %v266 = vunpack.c.l.b16 %v227
    %v267 = vunpack.c.l.b16 %v228
    %v268 = vunpack.c.l.b16 %v229
    %v269 = vunpack.c.l.b16 %v230
    %v270 = vunpack.c.l.b16 %v231
    %v271 = vpack.c.b16 %v256, %v255
    %v272 = vpack.c.b16 %v258, %v257
    %v273 = vpack.c.b16 %v260, %v259
    %v274 = vpack.c.b16 %v262, %v261
    %v275 = vpack.c.b16 %v264, %v263
    %v276 = vpack.c.b16 %v266, %v265
    %v277 = vpack.c.b16 %v268, %v267
    %v278 = vpack.c.b16 %v270, %v269
    %287 = vmatprep.subr.bf16.mxu0 0
    %288 = vmatpush1.bf16.msra.mxu0 %v278
    %289 = vmatprep.subr.bf16.mxu0 0
    %290 = vmatpush1.bf16.msra.mxu0 %v277
    %291 = vmatprep.subr.bf16.mxu0 0
    %292 = vmatpush1.bf16.msra.mxu0 %v276
    %293 = vmatprep.subr.bf16.mxu0 0
    %294 = vmatpush1.bf16.msra.mxu0 %v275
    %295 = vmatprep.subr.bf16.mxu0 0
    %296 = vmatpush1.bf16.msra.mxu0 %v274
    %297 = vmatprep.subr.bf16.mxu0 0
    %298 = vmatpush1.bf16.msra.mxu0 %v273
    %299 = vmatprep.subr.bf16.mxu0 0
    %300 = vmatpush1.bf16.msra.mxu0 %v272
    %301 = vmatprep.subr.bf16.mxu0 0
    %302 = vmatpush1.bf16.msra.mxu0 %v271
    %303 = vmatprep.subr.bf16.mxu0 0
    %304 = vmatpush2.bf16.msra.mxu0 0
    %305 = vmatprep.subr.bf16.mxu0 0
    %306 = vmatpush2.bf16.msra.mxu0 0
    %307 = vmatprep.subr.bf16.mxu0 0
    %308 = vmatpush2.bf16.msra.mxu0 0
    %309 = vmatprep.subr.bf16.mxu0 0
    %310 = vmatpush2.bf16.msra.mxu0 0
    %311 = vmatprep.subr.bf16.mxu0 0
    %312 = vmatpush2.bf16.msra.mxu0 0
    %313 = vmatprep.subr.bf16.mxu0 0
    %314 = vmatpush2.bf16.msra.mxu0 0
    %315 = vmatprep.subr.bf16.mxu0 0
    %316 = vmatpush2.bf16.msra.mxu0 0
    %317 = vmatprep.subr.bf16.mxu0 0
    %318 = vmatpush2.bf16.msra.mxu0 0
    %319 = vmatprep.mubr.bf16.mxu0 0
    %320 = vmatmul.mubr.bf16.gmra.mxu0 %v215
    %v321 = vpop.f32.mrf.mxu0
    %v322 = vadd.f32 %v237, %v321
    %v323 = vpop.f32.mrf.mxu0
    %v324 = vpop.f32.mrf.mxu0
    %v325 = vpop.f32.mrf.mxu0
    %326 = vdwg.mxu0
    %vm327 = vcmask 31744
    %328 = vst.msk [vmem:[%s7] sm:$0xff] %vm327, %v322
    // Predicated region
    $region34: #{tpu_custom_call.1} parent=1 // pred_check
      _
    $region35: #{tpu_custom_call.1} parent=1 // pred_check_branch
      %330 = sbr.rel (0) target = $region37
    $region36: #{tpu_custom_call.1} parent=1 // pred_region
      _
    $region37: #{tpu_custom_call.1} parent=1 // pred_fallthru
      _
    // Predicated region
    $region38: #{tpu_custom_call.1} parent=1 // pred_check
      _
    $region39: #{tpu_custom_call.1} parent=1 // pred_check_branch
      %332 = sbr.rel (0) target = $region41
    $region40: #{tpu_custom_call.1} parent=1 // pred_region
      _
    $region41: #{tpu_custom_call.1} parent=1 // pred_fallthru
      _
    %333 = vsyncpa [#allocation3], 1

</llo_original>
